<compile_context>
chip_gen: v6e
topology: v6e:2x2x1
jax: 0.10.0
libtpu: 0.0.40
codegen_flags: <defaults>
</compile_context>

<pallas_src>
import jax
import jax.numpy as jnp
from jax.experimental import pallas as pl
from jax.experimental.pallas import tpu as pltpu


def _awgn_kernel(noise_std_ref, x_ref, noise_ref, o_ref):
    # noise_std_ref: (1,) f32 in SMEM (scalar read is free).
    # x_ref / noise_ref / o_ref: (tile_rows, lanes) VMEM tiles.
    std = noise_std_ref[0]
    y = x_ref[...].astype(jnp.float32) + std * noise_ref[...]
    o_ref[...] = y.astype(o_ref.dtype)


_MAX_TILE_ROWS = 512          # (512, 1024) f32 = 2 MiB per tile buffer
_LANE_CHOICES = (1024, 512, 256, 128)


def _choose_layout(total):
    """Pick a lane-dense (rows, lanes) layout + row tiling for `total` elems."""
    lanes = _LANE_CHOICES[-1]
    for cand in _LANE_CHOICES:
        if total >= 8 * cand:
            lanes = cand
            break
    rows = -(-total // lanes)                       # ceil
    tile_rows = min(_MAX_TILE_ROWS, -(-rows // 8) * 8)
    padded_rows = -(-rows // tile_rows) * tile_rows
    return lanes, tile_rows, padded_rows


def awgn_channel(x, noise_std, noise_key):
    """Returns x + N(0, noise_std^2) noise, same shape/dtype as x."""
    orig_shape = x.shape
    total = x.size

    lanes, tile_rows, padded_rows = _choose_layout(total)
    padded_total = padded_rows * lanes

    xf = x.reshape(-1)
    if padded_total != total:
        xf = jnp.pad(xf, (0, padded_total - total))
    x2 = xf.reshape(padded_rows, lanes)

    noise = jax.random.normal(noise_key, (padded_rows, lanes), dtype=jnp.float32)
    std_arr = jnp.asarray([noise_std], dtype=jnp.float32)

    grid = (padded_rows // tile_rows,)

    out2 = pl.pallas_call(
        _awgn_kernel,
        out_shape=jax.ShapeDtypeStruct((padded_rows, lanes), x.dtype),
        grid_spec=pltpu.PrefetchScalarGridSpec(
            num_scalar_prefetch=0,
            grid=grid,
            in_specs=[
                # noise_std scalar lives in SMEM; whole (1,) array each step.
                pl.BlockSpec(memory_space=pltpu.MemorySpace.SMEM),
                pl.BlockSpec((tile_rows, lanes), lambda i: (i, 0)),
                pl.BlockSpec((tile_rows, lanes), lambda i: (i, 0)),
            ],
            out_specs=pl.BlockSpec((tile_rows, lanes), lambda i: (i, 0)),
        ),
        compiler_params=pltpu.CompilerParams(
            dimension_semantics=("parallel",)),
        # x2 (input index 1: std_arr=0, x2=1, noise=2) aliases the output.
        input_output_aliases={1: 0},
    )(std_arr, x2, noise)

    return out2.reshape(-1)[:total].reshape(orig_shape)


if __name__ == "__main__":
    key = jax.random.PRNGKey(0)
    x_key, n_key = jax.random.split(key)
    x = jax.random.normal(x_key, (2, 4, 16, 16), dtype=jnp.float32)  # NCHW
    noise_std = 0.1

    y = awgn_channel(x, noise_std, n_key)
    y = jax.block_until_ready(y)

    # Sanity checks: shape/dtype preserved, noise magnitude roughly noise_std.
    assert y.shape == x.shape and y.dtype == x.dtype
    resid = y - x
    assert float(jnp.abs(resid).mean()) > 0.0          # noise actually added
    assert abs(float(jnp.std(resid)) - noise_std) < 0.3 * noise_std
    assert float(jnp.abs(resid).max()) < 10.0 * noise_std

    print("KERNEL_OK")
</pallas_src>

<mosaic_0001>
module attributes {stable_mosaic.version = 11 : i64} {
  func.func @_awgn_kernel(%arg0: i32, %arg1: memref<1xf32, #tpu.memory_space<smem>>, %arg2: memref<8x256xf32, #tpu.memory_space<vmem>>, %arg3: memref<8x256xf32, #tpu.memory_space<vmem>>, %arg4: memref<8x256xf32, #tpu.memory_space<vmem>>) attributes {dimension_semantics = [#tpu.dimension_semantics<parallel>], iteration_bounds = array<i64: 1>, scalar_prefetch = 0 : i64, scratch_operands = 0 : i64, tpu.core_type = #tpu.core_type<tc>, window_params = [{transform_indices = @transform_0, window_bounds = array<i64: 1>}, {transform_indices = @transform_1, window_bounds = array<i64: 8, 256>}, {transform_indices = @transform_2, window_bounds = array<i64: 8, 256>}, {transform_indices = @transform_3, window_bounds = array<i64: 8, 256>}]} {
    %c0 = arith.constant 0 : index
    %0 = memref.load %arg1[%c0] : memref<1xf32, #tpu.memory_space<smem>>
    %c0_0 = arith.constant 0 : index
    %c0_1 = arith.constant 0 : index
    %1 = vector.load %arg2[%c0_0, %c0_1] : memref<8x256xf32, #tpu.memory_space<vmem>>, vector<8x256xf32>
    %c0_2 = arith.constant 0 : index
    %c0_3 = arith.constant 0 : index
    %2 = vector.load %arg3[%c0_2, %c0_3] : memref<8x256xf32, #tpu.memory_space<vmem>>, vector<8x256xf32>
    %3 = vector.broadcast %0 : f32 to vector<8x256xf32>
    %4 = arith.mulf %3, %2 : vector<8x256xf32>
    %5 = arith.addf %1, %4 : vector<8x256xf32>
    %c0_4 = arith.constant 0 : index
    %c0_5 = arith.constant 0 : index
    %6 = vector.load %arg4[%c0_4, %c0_5] : memref<8x256xf32, #tpu.memory_space<vmem>>, vector<8x256xf32>
    tpu.vector_store %arg4[%c0_4, %c0_5], %5 {strides = array<i32>} : memref<8x256xf32, #tpu.memory_space<vmem>>, vector<8x256xf32>,
    return
  }
  func.func @transform_0(%arg0: i32) -> i32 {
    %c0_i32 = arith.constant 0 : i32
    %c0_i32_0 = arith.constant 0 : i32
    return %c0_i32 : i32
  }
  func.func @transform_1(%arg0: i32) -> (i32, i32) {
    %c0_i32 = arith.constant 0 : i32
    %c0_i32_0 = arith.constant 0 : i32
    return %arg0, %c0_i32 : i32, i32
  }
  func.func @transform_2(%arg0: i32) -> (i32, i32) {
    %c0_i32 = arith.constant 0 : i32
    %c0_i32_0 = arith.constant 0 : i32
    return %arg0, %c0_i32 : i32, i32
  }
  func.func @transform_3(%arg0: i32) -> (i32, i32) {
    %c0_i32 = arith.constant 0 : i32
    %c0_i32_0 = arith.constant 0 : i32
    return %arg0, %c0_i32 : i32, i32
  }
}

</mosaic_0001>

<llo_original>
// kernel: tpu_custom_call.1
$region0: #{tpu_custom_call.1}
  #allocation0 [shape = 'u32[]', space=smem, size = 0x4, offset = 0x4, fixed_abs, tag = 'smem constant byte address 0x4 - core index']
  #allocation1 [shape = 'u32[144,128]{1,0:T(1,128)}', space=vmem, size = 0x12000, scoped, tag = 'internal scratch']
  #allocation2 [shape = 'f32[1]{0:T(128)S(6)}', space=smem, size = 0x200, scoped, tag = 'scoped memory for tpu_custom_call.1']
  %s0 = inlined_call_operand.<no memory space> [shape: f32[1], index: 0, kind: input, shape index: {}]
  %s1 = inlined_call_operand.hbm [shape: f32[8,256], index: 1, kind: input, shape index: {}, may-alias: {1,3}]
  %s2 = inlined_call_operand.vmem [shape: f32[8,256], index: 2, kind: input, shape index: {}]
  %s3 = inlined_call_operand.hbm [shape: f32[8,256], index: 3, kind: output, shape index: {}, may-alias: {1,3}]
  %s4 = sld [smem:[#allocation0]]
  $region26: #{tpu_custom_call.1} parent=0
    _
  %s6 = ssub.s32 1, %s4
  %s7 = scalar_select 0, %s6, %s4
  %8 = sst [smem:[#allocation2]] %s0
  $region1: #{tpu_custom_call.1} parent=0
    #allocation3 [shape = 'u8[8192]{0}', space=vmem, size = 0x2000, scoped, tag = 'input window, operand 1, single buffered']
    #allocation4 [shape = 's32[1]{0}', space=sflag, size = 0x4, scoped, tag = 'scoped memory for tpu_custom_call.1']
    #allocation5 [shape = 's32[1]{0}', space=sflag, size = 0x4, scoped, tag = 'scoped memory for tpu_custom_call.1']
    #allocation6 [shape = 'u8[8192]{0}', space=vmem, size = 0x2000, scoped, tag = 'output window, operand 0, single buffered']
    %9 = vsyncpa [#allocation4], 0
    %10 = vsyncpa [#allocation5], 0
    // Predicated region
    $region2: #{tpu_custom_call.1} parent=1 // pred_check
      _
    $region3: #{tpu_custom_call.1} parent=1 // pred_check_branch
      %12 = sbr.rel (0) target = $region5
    $region4: #{tpu_custom_call.1} parent=1 // pred_region
      _
    $region5: #{tpu_custom_call.1} parent=1 // pred_fallthru
      _
    // Predicated region
    $region6: #{tpu_custom_call.1} parent=1 // pred_check
      _
    $region7: #{tpu_custom_call.1} parent=1 // pred_check_branch
      %14 = sbr.rel (0) target = $region9
    $region8: #{tpu_custom_call.1} parent=1 // pred_region
      %s16 = ssub.s32 256, 256
      %17 = vsyncadd [#allocation4], %s16
      %s19 = sshll.u32 [#allocation3], 4
      %s20 = int_to_ptr.vmem [resolvable:$true] %s19
      %22 = dma.hbm_to_vmem [thread:$0]  %s1, 256, %s20, [#allocation4]
    $region9: #{tpu_custom_call.1} parent=1 // pred_fallthru
      _
    // Predicated region
    $region10: #{tpu_custom_call.1} parent=1 // pred_check
      _
    $region11: #{tpu_custom_call.1} parent=1 // pred_check_branch
      %24 = sbr.rel (0) target = $region13
    $region12: #{tpu_custom_call.1} parent=1 // pred_region
      _
    $region13: #{tpu_custom_call.1} parent=1 // pred_fallthru
      _
    // Predicated region
    $region14: #{tpu_custom_call.1} parent=1 // pred_check
      _
    $region15: #{tpu_custom_call.1} parent=1 // pred_check_branch
      %26 = sbr.rel (0) target = $region17
    $region16: #{tpu_custom_call.1} parent=1 // pred_region
      %27 = dma.done [#allocation4], 256
    $region17: #{tpu_custom_call.1} parent=1 // pred_fallthru
      _
    %s28 = sld [smem:[#allocation2]]
    %v29 = vld [vmem:[#allocation3] sm:$0xff]
    %v30 = vld [vmem:[#allocation3 + $0x8] sm:$0xff]
    %v31 = vld [vmem:[%s2] sm:$0xff]
    %v32 = vld [vmem:[%s2 + $0x8] sm:$0xff]
    %v33 = vstv %s28
    %v34 = vmul.f32 %v33, %v31
    %v35 = vmul.f32 %v33, %v32
    %v36 = vadd.f32 %v29, %v34
    %v37 = vadd.f32 %v30, %v35
    %38 = vst [vmem:[#allocation6] sm:$0xff] %v36
    %39 = vst [vmem:[#allocation6 + $0x8] sm:$0xff] %v37
    // Predicated region
    $region18: #{tpu_custom_call.1} parent=1 // pred_check
      _
    $region19: #{tpu_custom_call.1} parent=1 // pred_check_branch
      %41 = sbr.rel (0) target = $region21
    $region20: #{tpu_custom_call.1} parent=1 // pred_region
      %s43 = ssub.s32 256, 256
      %44 = vsyncadd [#allocation5], %s43
      %s46 = sshll.u32 [#allocation6], 4
      %s47 = int_to_ptr.vmem [resolvable:$true] %s46
      %49 = dma.vmem_to_hbm [thread:$0]  %s47, 256, %s3, [#allocation5]
    $region21: #{tpu_custom_call.1} parent=1 // pred_fallthru
      _
    // Predicated region
    $region22: #{tpu_custom_call.1} parent=1 // pred_check
      _
    $region23: #{tpu_custom_call.1} parent=1 // pred_check_branch
      %51 = sbr.rel (0) target = $region25
    $region24: #{tpu_custom_call.1} parent=1 // pred_region
      %52 = dma.done [#allocation5], 256
    $region25: #{tpu_custom_call.1} parent=1 // pred_fallthru
      _
    %53 = vsyncpa [#allocation4], 1
    %54 = vsyncpa [#allocation5], 1

</llo_original>
